<compile_context>
chip_gen: v6e
topology: v6e:2x2x1
jax: 0.10.0
libtpu: 0.0.40
codegen_flags: <defaults>
</compile_context>

<pallas_src>
import functools
import math

import jax
import jax.numpy as jnp
from jax.experimental import pallas as pl
from jax.experimental.pallas import tpu as pltpu


def _round_up(x, m):
    return (x + m - 1) // m * m


def _choose_band_rows(h, w, target_lanes=4096, max_rows=32):
    """Pick rows-per-band: divides H, keeps band_rows*W a multiple of 128
    (lane-dense output stores) and band width under `target_lanes`.

    Generation note: with hidden~32 a band of <=4096 lanes costs well under
    1 MB of VMEM, so the default fits v5e's 16 MiB scoped limit as well as
    v6e/v7x; on v6e (128 MiB VMEM) `target_lanes` can be raised to amortize
    per-step overhead further.
    """
    step = 128 // math.gcd(w, 128)
    best = None
    r = step
    while r <= min(h, max_rows):
        if h % r == 0 and r * (w + 2) <= target_lanes:
            best = r
        r += step
    # TODO(synk): ragged H (no suitable divisor) falls back to whole-image
    # blocking; pad H upstream for very large ragged images.
    return best if best is not None else h


# ----------------------------- Pallas kernel ------------------------------ #

def _segmodel_kernel(x_ref, w1t_ref, b1_ref, w2t_ref, b2_ref, out_ref,
                     stage_ref, *, c_in, w_img, w_pad, band_rows,
                     apply_softmax):
    """Fused 3x3 conv -> ReLU -> 1x1 conv -> optional channel softmax.

    Channels on sublanes, pixels on lanes.
      x_ref     : [c_in, L]                 bf16 band of the zero-padded image,
                                            rows flattened, L >= (band_rows+2)*w_pad + 2
      w1t_ref   : [hidden, 9*c_in]          bf16, columns in (dh, dw, c) order
      b1_ref    : [hidden, 1]               f32
      w2t_ref   : [n_out, hidden]           bf16
      b2_ref    : [n_out, 1]                f32
      out_ref   : [n_out, band_rows*w_img]  bf16 dense NCHW slice
      stage_ref : [9*c_in, band_rows*w_pad] bf16 tap-staging block (VMEM)
    """
    tp = band_rows * w_pad                       # padded-width pixels per band

    # Stage the 9 conv taps as lane-shifted copies of the band, then run ONE
    # K = 9*c_in matmul on the MXU (instead of 9 K=c_in matmuls + f32 adds).
    for t in range(9):                           # static unroll
        dh, dw = divmod(t, 3)
        off = dh * w_pad + dw                    # flat pixel shift of this tap
        stage_ref[t * c_in:(t + 1) * c_in, :] = x_ref[:, off:off + tp]

    h = jnp.dot(w1t_ref[...], stage_ref[...],
                preferred_element_type=jnp.float32)          # [hidden, tp]
    h = jnp.maximum(h + b1_ref[...], 0.0)                    # bias + ReLU (f32)
    logits = jnp.dot(w2t_ref[...], h.astype(w2t_ref.dtype),
                     preferred_element_type=jnp.float32) + b2_ref[...]

    if apply_softmax:
        # numerically stable softmax over the channel (sublane) axis; exact
        # normalization (no approx reciprocal) so probabilities sum to 1.
        m = jnp.max(logits, axis=0, keepdims=True)
        e = jnp.exp(logits - m)
        logits = e / jnp.sum(e, axis=0, keepdims=True)

    # Skip the 2 pad columns of each row at store time: the output block is a
    # dense [n_out, band_rows*w_img] NCHW slice (no post-kernel crop pass).
    for r in range(band_rows):                   # static unroll (band_rows <= 32)
        out_ref[:, r * w_img:(r + 1) * w_img] = (
            logits[:, r * w_pad:r * w_pad + w_img].astype(out_ref.dtype))


# ------------------------------- Wrapper ----------------------------------- #

def segmodel_forward(x_nchw, w1, b1, w2, b2, *, softmax=False, band_rows=None):
    """SegModel.forward equivalent.

    x_nchw : [B, C_in, H, W]   (PyTorch NCHW)
    w1     : [9*C_in, hidden]  3x3 conv weight, rows in (dh, dw, c_in) order
    b1     : [1, hidden]
    w2     : [hidden, n_out]   1x1 conv weight
    b2     : [1, n_out]
    returns: [B, n_out, H, W]  bf16 logits (or channel-softmax probabilities)
    """
    B, C, H, W = x_nchw.shape
    hidden = w1.shape[1]
    n_out = w2.shape[1]

    if band_rows is None:
        band_rows = _choose_band_rows(H, W)
    assert H % band_rows == 0, "band_rows must divide H"
    nb = H // band_rows
    w_pad = W + 2
    tp = band_rows * w_pad                              # pixels computed / band
    # band input window (1-row halo top & bottom + tap slack), lane padded
    l_band = _round_up((band_rows + 2) * w_pad + 2, 128)

    # --- host/XLA glue --------------------------------------------------- #
    # TODO(synk): in production this prep (halo pad, banded gather, bf16 cast,
    # weight transpose/cast) is hoisted out of the per-call hot path (one-time
    # weight prep, halo DMA'd in-kernel from an ANY-space ref).
    xp = jnp.pad(x_nchw.astype(jnp.bfloat16),
                 ((0, 0), (0, 0), (1, 1), (1, 1)))            # [B,C,H+2,W+2]
    xflat = xp.reshape(B, C, (H + 2) * w_pad)
    xflat = jnp.pad(xflat, ((0, 0), (0, 0), (0, l_band)))     # slack, last band
    idx = (jnp.arange(nb) * (band_rows * w_pad))[:, None] + jnp.arange(l_band)
    x_bands = jnp.transpose(xflat[:, :, idx], (0, 2, 1, 3))   # [B, NB, C, L]

    w1t = jnp.transpose(w1).astype(jnp.bfloat16)              # [hidden, 9C]
    w2t = jnp.transpose(w2).astype(jnp.bfloat16)              # [n_out, hidden]
    b1t = jnp.reshape(b1, (hidden, 1)).astype(jnp.float32)
    b2t = jnp.reshape(b2, (n_out, 1)).astype(jnp.float32)

    kernel = functools.partial(
        _segmodel_kernel, c_in=C, w_img=W, w_pad=w_pad,
        band_rows=band_rows, apply_softmax=softmax)

    out = pl.pallas_call(
        kernel,
        out_shape=jax.ShapeDtypeStruct((B, n_out, H * W), jnp.bfloat16),
        grid_spec=pltpu.PrefetchScalarGridSpec(
            num_scalar_prefetch=0,
            grid=(B, nb),
            in_specs=[
                # per-(batch, band) image window
                pl.BlockSpec((None, None, C, l_band), lambda b, j: (b, j, 0, 0)),
                # weights/biases: constant index maps -> stay resident in VMEM
                pl.BlockSpec((hidden, 9 * C), lambda b, j: (0, 0)),
                pl.BlockSpec((hidden, 1), lambda b, j: (0, 0)),
                pl.BlockSpec((n_out, hidden), lambda b, j: (0, 0)),
                pl.BlockSpec((n_out, 1), lambda b, j: (0, 0)),
            ],
            out_specs=pl.BlockSpec((None, n_out, band_rows * W),
                                   lambda b, j: (b, 0, j)),
            scratch_shapes=[pltpu.VMEM((9 * C, tp), jnp.bfloat16)],
        ),
        compiler_params=pltpu.CompilerParams(
            dimension_semantics=("parallel", "parallel")),
    )(x_bands, w1t, b1t, w2t, b2t)

    # Free reshape (only splits the trailing dim): output is already dense NCHW.
    return out.reshape(B, n_out, H, W)


# ----------------------------- Reference (JAX) ----------------------------- #

def _reference(x_nchw, w1, b1, w2, b2, softmax=False):
    """Pure-JAX reference with the same bf16 matmul-input quantization."""
    f32 = jnp.float32
    q = lambda a: a.astype(jnp.bfloat16).astype(f32)
    B, C, H, W = x_nchw.shape
    xp = jnp.pad(q(x_nchw), ((0, 0), (0, 0), (1, 1), (1, 1)))
    cols = []
    for dh in range(3):
        for dw in range(3):
            cols.append(xp[:, :, dh:dh + H, dw:dw + W])       # [B,C,H,W]
    xc = jnp.concatenate(cols, axis=1)                        # (dh,dw,c) order
    xc = jnp.transpose(xc, (0, 2, 3, 1)).reshape(B * H * W, 9 * C)
    h = jnp.maximum(xc @ q(w1) + b1, 0.0)
    logits = q(h) @ q(w2) + b2
    if softmax:
        logits = jax.nn.softmax(logits, axis=-1)
    return jnp.transpose(logits.reshape(B, H, W, -1), (0, 3, 1, 2))


# ---------------------------------- Main ----------------------------------- #

if __name__ == "__main__":
    # Small config consistent with the module:
    #   num_classes = 8, grid_dims = 2, use_mask_loss = False
    #   -> decoder output channels = num_classes + grid_dims = 10
    B, C_in, H, W = 2, 4, 16, 16
    hidden = 32
    num_classes, grid_dims = 8, 2
    n_out = num_classes + grid_dims

    key = jax.random.PRNGKey(0)
    kx, kw1, kb1, kw2, kb2 = jax.random.split(key, 5)

    x = jax.random.normal(kx, (B, C_in, H, W), dtype=jnp.float32)
    # Synthetic parameters (PyTorch conv weights, re-laid-out):
    #   conv1: (hidden, C_in, 3, 3) -> im2col layout [(dh,dw,c_in), hidden]
    #   conv2: (n_out, hidden, 1, 1) -> [hidden, n_out]
    w1 = 0.1 * jax.random.normal(kw1, (9 * C_in, hidden), dtype=jnp.float32)
    b1 = 0.1 * jax.random.normal(kb1, (1, hidden), dtype=jnp.float32)
    w2 = 0.1 * jax.random.normal(kw2, (hidden, n_out), dtype=jnp.float32)
    b2 = 0.1 * jax.random.normal(kb2, (1, n_out), dtype=jnp.float32)

    fwd = jax.jit(segmodel_forward, static_argnames=("softmax", "band_rows"))

    # band_rows=8 -> 2 row-bands per image: exercises the halo/banding path and
    # gives grid (2, 2) = 4 parallel steps (both v7x TensorCores busy).
    out_logits = jax.block_until_ready(
        fwd(x, w1, b1, w2, b2, softmax=False, band_rows=8))
    out_probs = jax.block_until_ready(
        fwd(x, w1, b1, w2, b2, softmax=True, band_rows=8))

    ref_logits = _reference(x, w1, b1, w2, b2, softmax=False)
    ref_probs = _reference(x, w1, b1, w2, b2, softmax=True)

    assert out_logits.shape == (B, n_out, H, W)
    assert out_probs.shape == (B, n_out, H, W)
    # bf16 matmul inputs + bf16 output quantization -> moderate tolerances.
    assert jnp.allclose(out_logits.astype(jnp.float32), ref_logits,
                        atol=2e-2, rtol=2e-2)
    assert jnp.allclose(out_probs.astype(jnp.float32), ref_probs,
                        atol=1e-2, rtol=1e-2)
    assert bool(jnp.all(jnp.isfinite(out_logits.astype(jnp.float32))))

    print("KERNEL_OK")
</pallas_src>

<mosaic_0001>
module attributes {stable_mosaic.version = 11 : i64} {
  func.func @_segmodel_kernel(%arg0: i32, %arg1: i32, %arg2: memref<1x1x4x256xbf16, #tpu.memory_space<vmem>>, %arg3: memref<32x36xbf16, #tpu.memory_space<vmem>>, %arg4: memref<32x1xf32, #tpu.memory_space<vmem>>, %arg5: memref<10x32xbf16, #tpu.memory_space<vmem>>, %arg6: memref<10x1xf32, #tpu.memory_space<vmem>>, %arg7: memref<1x10x128xbf16, #tpu.memory_space<vmem>>, %arg8: memref<36x144xbf16, #tpu.memory_space<vmem>>) attributes {dimension_semantics = [#tpu.dimension_semantics<parallel>, #tpu.dimension_semantics<parallel>], iteration_bounds = array<i64: 2, 2>, scalar_prefetch = 0 : i64, scratch_operands = 1 : i64, tpu.core_type = #tpu.core_type<tc>, window_params = [{transform_indices = @transform_0, window_bounds = array<i64: 1, 1, 4, 256>}, {pipeline_mode = #tpu.pipeline_mode<synchronous>, transform_indices = @transform_1, window_bounds = array<i64: 32, 36>}, {pipeline_mode = #tpu.pipeline_mode<synchronous>, transform_indices = @transform_2, window_bounds = array<i64: 32, 1>}, {pipeline_mode = #tpu.pipeline_mode<synchronous>, transform_indices = @transform_3, window_bounds = array<i64: 10, 32>}, {pipeline_mode = #tpu.pipeline_mode<synchronous>, transform_indices = @transform_4, window_bounds = array<i64: 10, 1>}, {transform_indices = @transform_5, window_bounds = array<i64: 1, 10, 128>}]} {
    %c0 = arith.constant 0 : index
    %c0_0 = arith.constant 0 : index
    %c0_1 = arith.constant 0 : index
    %c0_2 = arith.constant 0 : index
    %0 = vector.load %arg2[%c0, %c0_0, %c0_1, %c0_2] : memref<1x1x4x256xbf16, #tpu.memory_space<vmem>>, vector<1x1x4x144xbf16>
    %1 = vector.shape_cast %0 : vector<1x1x4x144xbf16> to vector<4x144xbf16>
    %c0_3 = arith.constant 0 : index
    %c0_4 = arith.constant 0 : index
    %2 = vector.load %arg8[%c0_3, %c0_4] : memref<36x144xbf16, #tpu.memory_space<vmem>>, vector<4x144xbf16>
    tpu.vector_store %arg8[%c0_3, %c0_4], %1 {strides = array<i32>} : memref<36x144xbf16, #tpu.memory_space<vmem>>, vector<4x144xbf16>,
    %c0_5 = arith.constant 0 : index
    %c0_6 = arith.constant 0 : index
    %c0_7 = arith.constant 0 : index
    %c1 = arith.constant 1 : index
    %3 = vector.load %arg2[%c0_5, %c0_6, %c0_7, %c1] : memref<1x1x4x256xbf16, #tpu.memory_space<vmem>>, vector<1x1x4x144xbf16>
    %4 = vector.shape_cast %3 : vector<1x1x4x144xbf16> to vector<4x144xbf16>
    %c4 = arith.constant 4 : index
    %c0_8 = arith.constant 0 : index
    %5 = vector.load %arg8[%c4, %c0_8] : memref<36x144xbf16, #tpu.memory_space<vmem>>, vector<4x144xbf16>
    tpu.vector_store %arg8[%c4, %c0_8], %4 {strides = array<i32>} : memref<36x144xbf16, #tpu.memory_space<vmem>>, vector<4x144xbf16>,
    %c0_9 = arith.constant 0 : index
    %c0_10 = arith.constant 0 : index
    %c0_11 = arith.constant 0 : index
    %c2 = arith.constant 2 : index
    %6 = vector.load %arg2[%c0_9, %c0_10, %c0_11, %c2] : memref<1x1x4x256xbf16, #tpu.memory_space<vmem>>, vector<1x1x4x144xbf16>
    %7 = vector.shape_cast %6 : vector<1x1x4x144xbf16> to vector<4x144xbf16>
    %c8 = arith.constant 8 : index
    %c0_12 = arith.constant 0 : index
    %8 = vector.load %arg8[%c8, %c0_12] : memref<36x144xbf16, #tpu.memory_space<vmem>>, vector<4x144xbf16>
    tpu.vector_store %arg8[%c8, %c0_12], %7 {strides = array<i32>} : memref<36x144xbf16, #tpu.memory_space<vmem>>, vector<4x144xbf16>,
    %c0_13 = arith.constant 0 : index
    %c0_14 = arith.constant 0 : index
    %c0_15 = arith.constant 0 : index
    %c18 = arith.constant 18 : index
    %9 = vector.load %arg2[%c0_13, %c0_14, %c0_15, %c18] : memref<1x1x4x256xbf16, #tpu.memory_space<vmem>>, vector<1x1x4x144xbf16>
    %10 = vector.shape_cast %9 : vector<1x1x4x144xbf16> to vector<4x144xbf16>
    %c12 = arith.constant 12 : index
    %c0_16 = arith.constant 0 : index
    %11 = vector.load %arg8[%c12, %c0_16] : memref<36x144xbf16, #tpu.memory_space<vmem>>, vector<4x144xbf16>
    tpu.vector_store %arg8[%c12, %c0_16], %10 {strides = array<i32>} : memref<36x144xbf16, #tpu.memory_space<vmem>>, vector<4x144xbf16>,
    %c0_17 = arith.constant 0 : index
    %c0_18 = arith.constant 0 : index
    %c0_19 = arith.constant 0 : index
    %c19 = arith.constant 19 : index
    %12 = vector.load %arg2[%c0_17, %c0_18, %c0_19, %c19] : memref<1x1x4x256xbf16, #tpu.memory_space<vmem>>, vector<1x1x4x144xbf16>
    %13 = vector.shape_cast %12 : vector<1x1x4x144xbf16> to vector<4x144xbf16>
    %c16 = arith.constant 16 : index
    %c0_20 = arith.constant 0 : index
    %14 = vector.load %arg8[%c16, %c0_20] : memref<36x144xbf16, #tpu.memory_space<vmem>>, vector<4x144xbf16>
    tpu.vector_store %arg8[%c16, %c0_20], %13 {strides = array<i32>} : memref<36x144xbf16, #tpu.memory_space<vmem>>, vector<4x144xbf16>,
    %c0_21 = arith.constant 0 : index
    %c0_22 = arith.constant 0 : index
    %c0_23 = arith.constant 0 : index
    %c20 = arith.constant 20 : index
    %15 = vector.load %arg2[%c0_21, %c0_22, %c0_23, %c20] : memref<1x1x4x256xbf16, #tpu.memory_space<vmem>>, vector<1x1x4x144xbf16>
    %16 = vector.shape_cast %15 : vector<1x1x4x144xbf16> to vector<4x144xbf16>
    %c20_24 = arith.constant 20 : index
    %c0_25 = arith.constant 0 : index
    %17 = vector.load %arg8[%c20_24, %c0_25] : memref<36x144xbf16, #tpu.memory_space<vmem>>, vector<4x144xbf16>
    tpu.vector_store %arg8[%c20_24, %c0_25], %16 {strides = array<i32>} : memref<36x144xbf16, #tpu.memory_space<vmem>>, vector<4x144xbf16>,
    %c0_26 = arith.constant 0 : index
    %c0_27 = arith.constant 0 : index
    %c0_28 = arith.constant 0 : index
    %c36 = arith.constant 36 : index
    %18 = vector.load %arg2[%c0_26, %c0_27, %c0_28, %c36] : memref<1x1x4x256xbf16, #tpu.memory_space<vmem>>, vector<1x1x4x144xbf16>
    %19 = vector.shape_cast %18 : vector<1x1x4x144xbf16> to vector<4x144xbf16>
    %c24 = arith.constant 24 : index
    %c0_29 = arith.constant 0 : index
    %20 = vector.load %arg8[%c24, %c0_29] : memref<36x144xbf16, #tpu.memory_space<vmem>>, vector<4x144xbf16>
    tpu.vector_store %arg8[%c24, %c0_29], %19 {strides = array<i32>} : memref<36x144xbf16, #tpu.memory_space<vmem>>, vector<4x144xbf16>,
    %c0_30 = arith.constant 0 : index
    %c0_31 = arith.constant 0 : index
    %c0_32 = arith.constant 0 : index
    %c37 = arith.constant 37 : index
    %21 = vector.load %arg2[%c0_30, %c0_31, %c0_32, %c37] : memref<1x1x4x256xbf16, #tpu.memory_space<vmem>>, vector<1x1x4x144xbf16>
    %22 = vector.shape_cast %21 : vector<1x1x4x144xbf16> to vector<4x144xbf16>
    %c28 = arith.constant 28 : index
    %c0_33 = arith.constant 0 : index
    %23 = vector.load %arg8[%c28, %c0_33] : memref<36x144xbf16, #tpu.memory_space<vmem>>, vector<4x144xbf16>
    tpu.vector_store %arg8[%c28, %c0_33], %22 {strides = array<i32>} : memref<36x144xbf16, #tpu.memory_space<vmem>>, vector<4x144xbf16>,
    %c0_34 = arith.constant 0 : index
    %c0_35 = arith.constant 0 : index
    %c0_36 = arith.constant 0 : index
    %c38 = arith.constant 38 : index
    %24 = vector.load %arg2[%c0_34, %c0_35, %c0_36, %c38] : memref<1x1x4x256xbf16, #tpu.memory_space<vmem>>, vector<1x1x4x144xbf16>
    %25 = vector.shape_cast %24 : vector<1x1x4x144xbf16> to vector<4x144xbf16>
    %c32 = arith.constant 32 : index
    %c0_37 = arith.constant 0 : index
    %26 = vector.load %arg8[%c32, %c0_37] : memref<36x144xbf16, #tpu.memory_space<vmem>>, vector<4x144xbf16>
    tpu.vector_store %arg8[%c32, %c0_37], %25 {strides = array<i32>} : memref<36x144xbf16, #tpu.memory_space<vmem>>, vector<4x144xbf16>,
    %c0_38 = arith.constant 0 : index
    %c0_39 = arith.constant 0 : index
    %27 = vector.load %arg3[%c0_38, %c0_39] : memref<32x36xbf16, #tpu.memory_space<vmem>>, vector<32x36xbf16>
    %c0_40 = arith.constant 0 : index
    %c0_41 = arith.constant 0 : index
    %28 = vector.load %arg8[%c0_40, %c0_41] : memref<36x144xbf16, #tpu.memory_space<vmem>>, vector<36x144xbf16>
    %cst = arith.constant dense<0.000000e+00> : vector<32x144xf32>
    %29 = tpu.matmul %27, %28, %cst {dimension_numbers = #tpu.dot_dimension_numbers<[1], [0], [0], [1], [0, 0, 1, 1], [], []>} : vector<32x36xbf16>, vector<36x144xbf16>, vector<32x144xf32> -> vector<32x144xf32>
    %c0_42 = arith.constant 0 : index
    %c0_43 = arith.constant 0 : index
    %30 = vector.load %arg4[%c0_42, %c0_43] : memref<32x1xf32, #tpu.memory_space<vmem>>, vector<32x1xf32>
    %31 = vector.broadcast %30 : vector<32x1xf32> to vector<32x144xf32>
    %32 = arith.addf %29, %31 : vector<32x144xf32>
    %cst_44 = arith.constant 0.000000e+00 : f32
    %33 = vector.broadcast %cst_44 : f32 to vector<32x144xf32>
    %34 = arith.maximumf %32, %33 : vector<32x144xf32>
    %c0_45 = arith.constant 0 : index
    %c0_46 = arith.constant 0 : index
    %35 = vector.load %arg5[%c0_45, %c0_46] : memref<10x32xbf16, #tpu.memory_space<vmem>>, vector<10x32xbf16>
    %36 = arith.truncf %34 : vector<32x144xf32> to vector<32x144xbf16>
    %cst_47 = arith.constant dense<0.000000e+00> : vector<10x144xf32>
    %37 = tpu.matmul %35, %36, %cst_47 {dimension_numbers = #tpu.dot_dimension_numbers<[1], [0], [0], [1], [0, 0, 1, 1], [], []>} : vector<10x32xbf16>, vector<32x144xbf16>, vector<10x144xf32> -> vector<10x144xf32>
    %c0_48 = arith.constant 0 : index
    %c0_49 = arith.constant 0 : index
    %38 = vector.load %arg6[%c0_48, %c0_49] : memref<10x1xf32, #tpu.memory_space<vmem>>, vector<10x1xf32>
    %39 = vector.broadcast %38 : vector<10x1xf32> to vector<10x144xf32>
    %40 = arith.addf %37, %39 : vector<10x144xf32>
    %41 = vector.extract_strided_slice %40 {offsets = [0, 0], sizes = [10, 16], strides = [1, 1]} : vector<10x144xf32> to vector<10x16xf32>
    %42 = arith.truncf %41 : vector<10x16xf32> to vector<10x16xbf16>
    %c0_50 = arith.constant 0 : index
    %c0_51 = arith.constant 0 : index
    %c0_52 = arith.constant 0 : index
    %43 = vector.load %arg7[%c0_50, %c0_51, %c0_52] : memref<1x10x128xbf16, #tpu.memory_space<vmem>>, vector<1x10x16xbf16>
    %44 = vector.shape_cast %43 : vector<1x10x16xbf16> to vector<10x16xbf16>
    %45 = vector.shape_cast %42 : vector<10x16xbf16> to vector<1x10x16xbf16>
    tpu.vector_store %arg7[%c0_50, %c0_51, %c0_52], %45 {strides = array<i32>} : memref<1x10x128xbf16, #tpu.memory_space<vmem>>, vector<1x10x16xbf16>,
    %46 = vector.extract_strided_slice %40 {offsets = [0, 18], sizes = [10, 16], strides = [1, 1]} : vector<10x144xf32> to vector<10x16xf32>
    %47 = arith.truncf %46 : vector<10x16xf32> to vector<10x16xbf16>
    %c0_53 = arith.constant 0 : index
    %c0_54 = arith.constant 0 : index
    %c16_55 = arith.constant 16 : index
    %48 = vector.load %arg7[%c0_53, %c0_54, %c16_55] : memref<1x10x128xbf16, #tpu.memory_space<vmem>>, vector<1x10x16xbf16>
    %49 = vector.shape_cast %48 : vector<1x10x16xbf16> to vector<10x16xbf16>
    %50 = vector.shape_cast %47 : vector<10x16xbf16> to vector<1x10x16xbf16>
    tpu.vector_store %arg7[%c0_53, %c0_54, %c16_55], %50 {strides = array<i32>} : memref<1x10x128xbf16, #tpu.memory_space<vmem>>, vector<1x10x16xbf16>,
    %51 = vector.extract_strided_slice %40 {offsets = [0, 36], sizes = [10, 16], strides = [1, 1]} : vector<10x144xf32> to vector<10x16xf32>
    %52 = arith.truncf %51 : vector<10x16xf32> to vector<10x16xbf16>
    %c0_56 = arith.constant 0 : index
    %c0_57 = arith.constant 0 : index
    %c32_58 = arith.constant 32 : index
    %53 = vector.load %arg7[%c0_56, %c0_57, %c32_58] : memref<1x10x128xbf16, #tpu.memory_space<vmem>>, vector<1x10x16xbf16>
    %54 = vector.shape_cast %53 : vector<1x10x16xbf16> to vector<10x16xbf16>
    %55 = vector.shape_cast %52 : vector<10x16xbf16> to vector<1x10x16xbf16>
    tpu.vector_store %arg7[%c0_56, %c0_57, %c32_58], %55 {strides = array<i32>} : memref<1x10x128xbf16, #tpu.memory_space<vmem>>, vector<1x10x16xbf16>,
    %56 = vector.extract_strided_slice %40 {offsets = [0, 54], sizes = [10, 16], strides = [1, 1]} : vector<10x144xf32> to vector<10x16xf32>
    %57 = arith.truncf %56 : vector<10x16xf32> to vector<10x16xbf16>
    %c0_59 = arith.constant 0 : index
    %c0_60 = arith.constant 0 : index
    %c48 = arith.constant 48 : index
    %58 = vector.load %arg7[%c0_59, %c0_60, %c48] : memref<1x10x128xbf16, #tpu.memory_space<vmem>>, vector<1x10x16xbf16>
    %59 = vector.shape_cast %58 : vector<1x10x16xbf16> to vector<10x16xbf16>
    %60 = vector.shape_cast %57 : vector<10x16xbf16> to vector<1x10x16xbf16>
    tpu.vector_store %arg7[%c0_59, %c0_60, %c48], %60 {strides = array<i32>} : memref<1x10x128xbf16, #tpu.memory_space<vmem>>, vector<1x10x16xbf16>,
    %61 = vector.extract_strided_slice %40 {offsets = [0, 72], sizes = [10, 16], strides = [1, 1]} : vector<10x144xf32> to vector<10x16xf32>
    %62 = arith.truncf %61 : vector<10x16xf32> to vector<10x16xbf16>
    %c0_61 = arith.constant 0 : index
    %c0_62 = arith.constant 0 : index
    %c64 = arith.constant 64 : index
    %63 = vector.load %arg7[%c0_61, %c0_62, %c64] : memref<1x10x128xbf16, #tpu.memory_space<vmem>>, vector<1x10x16xbf16>
    %64 = vector.shape_cast %63 : vector<1x10x16xbf16> to vector<10x16xbf16>
    %65 = vector.shape_cast %62 : vector<10x16xbf16> to vector<1x10x16xbf16>
    tpu.vector_store %arg7[%c0_61, %c0_62, %c64], %65 {strides = array<i32>} : memref<1x10x128xbf16, #tpu.memory_space<vmem>>, vector<1x10x16xbf16>,
    %66 = vector.extract_strided_slice %40 {offsets = [0, 90], sizes = [10, 16], strides = [1, 1]} : vector<10x144xf32> to vector<10x16xf32>
    %67 = arith.truncf %66 : vector<10x16xf32> to vector<10x16xbf16>
    %c0_63 = arith.constant 0 : index
    %c0_64 = arith.constant 0 : index
    %c80 = arith.constant 80 : index
    %68 = vector.load %arg7[%c0_63, %c0_64, %c80] : memref<1x10x128xbf16, #tpu.memory_space<vmem>>, vector<1x10x16xbf16>
    %69 = vector.shape_cast %68 : vector<1x10x16xbf16> to vector<10x16xbf16>
    %70 = vector.shape_cast %67 : vector<10x16xbf16> to vector<1x10x16xbf16>
    tpu.vector_store %arg7[%c0_63, %c0_64, %c80], %70 {strides = array<i32>} : memref<1x10x128xbf16, #tpu.memory_space<vmem>>, vector<1x10x16xbf16>,
    %71 = vector.extract_strided_slice %40 {offsets = [0, 108], sizes = [10, 16], strides = [1, 1]} : vector<10x144xf32> to vector<10x16xf32>
    %72 = arith.truncf %71 : vector<10x16xf32> to vector<10x16xbf16>
    %c0_65 = arith.constant 0 : index
    %c0_66 = arith.constant 0 : index
    %c96 = arith.constant 96 : index
    %73 = vector.load %arg7[%c0_65, %c0_66, %c96] : memref<1x10x128xbf16, #tpu.memory_space<vmem>>, vector<1x10x16xbf16>
    %74 = vector.shape_cast %73 : vector<1x10x16xbf16> to vector<10x16xbf16>
    %75 = vector.shape_cast %72 : vector<10x16xbf16> to vector<1x10x16xbf16>
    tpu.vector_store %arg7[%c0_65, %c0_66, %c96], %75 {strides = array<i32>} : memref<1x10x128xbf16, #tpu.memory_space<vmem>>, vector<1x10x16xbf16>,
    %76 = vector.extract_strided_slice %40 {offsets = [0, 126], sizes = [10, 16], strides = [1, 1]} : vector<10x144xf32> to vector<10x16xf32>
    %77 = arith.truncf %76 : vector<10x16xf32> to vector<10x16xbf16>
    %c0_67 = arith.constant 0 : index
    %c0_68 = arith.constant 0 : index
    %c112 = arith.constant 112 : index
    %78 = vector.load %arg7[%c0_67, %c0_68, %c112] : memref<1x10x128xbf16, #tpu.memory_space<vmem>>, vector<1x10x16xbf16>
    %79 = vector.shape_cast %78 : vector<1x10x16xbf16> to vector<10x16xbf16>
    %80 = vector.shape_cast %77 : vector<10x16xbf16> to vector<1x10x16xbf16>
    tpu.vector_store %arg7[%c0_67, %c0_68, %c112], %80 {strides = array<i32>} : memref<1x10x128xbf16, #tpu.memory_space<vmem>>, vector<1x10x16xbf16>,
    return
  }
  func.func @transform_0(%arg0: i32, %arg1: i32) -> (i32, i32, i32, i32) {
    %c0_i32 = arith.constant 0 : i32
    %c0_i32_0 = arith.constant 0 : i32
    %c0_i32_1 = arith.constant 0 : i32
    return %arg0, %arg1, %c0_i32, %c0_i32_0 : i32, i32, i32, i32
  }
  func.func @transform_1(%arg0: i32, %arg1: i32) -> (i32, i32) {
    %c0_i32 = arith.constant 0 : i32
    %c0_i32_0 = arith.constant 0 : i32
    %c0_i32_1 = arith.constant 0 : i32
    return %c0_i32, %c0_i32_0 : i32, i32
  }
  func.func @transform_2(%arg0: i32, %arg1: i32) -> (i32, i32) {
    %c0_i32 = arith.constant 0 : i32
    %c0_i32_0 = arith.constant 0 : i32
    %c0_i32_1 = arith.constant 0 : i32
    return %c0_i32, %c0_i32_0 : i32, i32
  }
  func.func @transform_3(%arg0: i32, %arg1: i32) -> (i32, i32) {
    %c0_i32 = arith.constant 0 : i32
    %c0_i32_0 = arith.constant 0 : i32
    %c0_i32_1 = arith.constant 0 : i32
    return %c0_i32, %c0_i32_0 : i32, i32
  }
  func.func @transform_4(%arg0: i32, %arg1: i32) -> (i32, i32) {
    %c0_i32 = arith.constant 0 : i32
    %c0_i32_0 = arith.constant 0 : i32
    %c0_i32_1 = arith.constant 0 : i32
    return %c0_i32, %c0_i32_0 : i32, i32
  }
  func.func @transform_5(%arg0: i32, %arg1: i32) -> (i32, i32, i32) {
    %c0_i32 = arith.constant 0 : i32
    %c0_i32_0 = arith.constant 0 : i32
    return %arg0, %c0_i32, %arg1 : i32, i32, i32
  }
}

</mosaic_0001>

<llo_original>
// kernel: segmodel_forward.1
$region0: #{segmodel_forward.1}
  #allocation0 [shape = 'u32[]', space=smem, size = 0x4, offset = 0x4, fixed_abs, tag = 'smem constant byte address 0x4 - core index']
  #allocation1 [shape = 'u32[144,128]{1,0:T(1,128)}', space=vmem, size = 0x12000, scoped, tag = 'internal scratch']
  #allocation2 [shape = 'bf16[36,144]{1,0:T(8,128)(2,1)}', space=vmem, size = 0x5000, scoped, tag = 'scratch operand']
  %s0 = inlined_call_operand.vmem [shape: bf16[2,2,4,256], index: 0, kind: input, shape index: {}]
  %s1 = inlined_call_operand.vmem [shape: bf16[32,36], index: 1, kind: input, shape index: {}]
  %s2 = inlined_call_operand.vmem [shape: f32[32,1], index: 2, kind: input, shape index: {}]
  %s3 = inlined_call_operand.vmem [shape: bf16[10,32], index: 3, kind: input, shape index: {}]
  %s4 = inlined_call_operand.vmem [shape: f32[10,1], index: 4, kind: input, shape index: {}]
  %s5 = inlined_call_operand.vmem [shape: bf16[2,10,256], index: 5, kind: output, shape index: {}]
  %s6 = sld [smem:[#allocation0]]
  $region90: #{segmodel_forward.1} parent=0
    _
  %s8 = ssub.s32 1, %s6
  %s9 = scalar_select 0, %s8, %s6
  $region1: #{segmodel_forward.1} parent=0
    #allocation3 [shape = 'u8[8192]{0}', space=vmem, size = 0x2000, scoped, tag = 'output window, operand 0']
    loop: start=0, step=1, limit=6
    $region2: #{segmodel_forward.1} parent=1 // loop_pre_header
      _
    $region3: #{segmodel_forward.1} parent=1 // loop_header
      %s11 = sphi 0, %s15
      %p12 = scmp.ge.s32.totalorder %s11, 6
      %s18 = sphi 0, %s30
      %s19 = sphi 0, %s26
      %s20 = sphi 0, %s18
      %s21 = sphi 0, %s19
      %s22 = sphi 0, %s20
      %s23 = sphi 0, %s21
      %s35 = sphi 0, %s37
      %s38 = sphi 0, %s35
      %s39 = sphi 0, %s38
      %s55 = sphi 0, %s39
      %s59 = sphi 0, %s59
      %s61 = sphi 0, %s59
      %s62 = sphi 0, %s61
      %s76 = sphi 0, %s62
      %s80 = sphi 0, %s80
      %s82 = sphi 0, %s80
      %s83 = sphi 0, %s82
      %s97 = sphi 0, %s83
      %s101 = sphi 0, %s101
      %s103 = sphi 0, %s101
      %s104 = sphi 0, %s103
      %s118 = sphi 0, %s104
      %s122 = sphi 0, %s122
      %s124 = sphi 0, %s122
      %s125 = sphi 0, %s124
      %s139 = sphi 0, %s125
      %s147 = sphi 0, %s149
      %s150 = sphi 0, %s147
      %s151 = sphi 0, %s150
      %s167 = sphi 0, %s151
    $region4: #{segmodel_forward.1} parent=1 // loop_header_branch
      %14 = sbr.rel (%p12) target = $region8
    $region5: #{segmodel_forward.1} parent=1 // loop_body
      %s16 = ssub.s32 %s11, 1
      %s17 = ssub.s32 %s11, 2
      %s24 = sadd.s32 1, %s19
      %p25 = scmp.ge.s32.totalorder %s24, 2
      %s26 = scalar_select %p25, 0, %s24
      %s27 = sadd.s32 1, %s18
      %s28 = scalar_select %p25, %s27, %s18
      %p29 = scmp.ge.s32.totalorder %s28, 2
      %s30 = scalar_select %p29, 0, %s28
      %s31 = ssub.s32 %s18, %s30
      %s32 = ssub.s32 %s19, %s26
      %s33 = sor.u32 %s31, %s32
      %p34 = scmp.eq.s32.totalorder %s33, 0
      %s36 = sadd.s32 %s35, 1
      %s37 = scalar_select %p34, %s35, %s36
      %p40 = pneg %p34
      %p41 = scmp.eq.s32.totalorder %s11, 3
      %p42 = por %p40, %p41
      %p43 = scmp.ne.s32.totalorder %s35, %s38
      %p44 = scmp.eq.s32.totalorder %s11, 0
      %p45 = por %p43, %p44
      %p46 = scmp.ne.s32.totalorder %s35, %s38
      %p47 = scmp.eq.s32.totalorder %s16, 3
      %p48 = por %p46, %p47
      %p49 = scmp.ne.s32.totalorder %s38, %s39
      %p50 = scmp.eq.s32.totalorder %s16, 0
      %p51 = por %p49, %p50
      %p52 = scmp.ne.s32.totalorder %s38, %s39
      %p53 = scmp.eq.s32.totalorder %s17, 3
      %p54 = por %p52, %p53
      %p56 = scmp.ne.s32.totalorder %s39, %s55
      %p57 = scmp.eq.s32.totalorder %s17, 0
      %p58 = por %p56, %p57
      %s60 = sadd.s32 %s59, 1
      %p63 = scmp.eq.s32.totalorder %s11, 3
      %p64 = scmp.ne.s32.totalorder %s59, %s61
      %p65 = scmp.eq.s32.totalorder %s11, 0
      %p66 = por %p64, %p65
      %p67 = scmp.ne.s32.totalorder %s59, %s61
      %p68 = scmp.eq.s32.totalorder %s16, 3
      %p69 = por %p67, %p68
      %p70 = scmp.ne.s32.totalorder %s61, %s62
      %p71 = scmp.eq.s32.totalorder %s16, 0
      %p72 = por %p70, %p71
      %p73 = scmp.ne.s32.totalorder %s61, %s62
      %p74 = scmp.eq.s32.totalorder %s17, 3
      %p75 = por %p73, %p74
      %p77 = scmp.ne.s32.totalorder %s62, %s76
      %p78 = scmp.eq.s32.totalorder %s17, 0
      %p79 = por %p77, %p78
      %s81 = sadd.s32 %s80, 1
      %p84 = scmp.eq.s32.totalorder %s11, 3
      %p85 = scmp.ne.s32.totalorder %s80, %s82
      %p86 = scmp.eq.s32.totalorder %s11, 0
      %p87 = por %p85, %p86
      %p88 = scmp.ne.s32.totalorder %s80, %s82
      %p89 = scmp.eq.s32.totalorder %s16, 3
      %p90 = por %p88, %p89
      %p91 = scmp.ne.s32.totalorder %s82, %s83
      %p92 = scmp.eq.s32.totalorder %s16, 0
      %p93 = por %p91, %p92
      %p94 = scmp.ne.s32.totalorder %s82, %s83
      %p95 = scmp.eq.s32.totalorder %s17, 3
      %p96 = por %p94, %p95
      %p98 = scmp.ne.s32.totalorder %s83, %s97
      %p99 = scmp.eq.s32.totalorder %s17, 0
      %p100 = por %p98, %p99
      %s102 = sadd.s32 %s101, 1
      %p105 = scmp.eq.s32.totalorder %s11, 3
      %p106 = scmp.ne.s32.totalorder %s101, %s103
      %p107 = scmp.eq.s32.totalorder %s11, 0
      %p108 = por %p106, %p107
      %p109 = scmp.ne.s32.totalorder %s101, %s103
      %p110 = scmp.eq.s32.totalorder %s16, 3
      %p111 = por %p109, %p110
      %p112 = scmp.ne.s32.totalorder %s103, %s104
      %p113 = scmp.eq.s32.totalorder %s16, 0
      %p114 = por %p112, %p113
      %p115 = scmp.ne.s32.totalorder %s103, %s104
      %p116 = scmp.eq.s32.totalorder %s17, 3
      %p117 = por %p115, %p116
      %p119 = scmp.ne.s32.totalorder %s104, %s118
      %p120 = scmp.eq.s32.totalorder %s17, 0
      %p121 = por %p119, %p120
      %s123 = sadd.s32 %s122, 1
      %p126 = scmp.eq.s32.totalorder %s11, 3
      %p127 = scmp.ne.s32.totalorder %s122, %s124
      %p128 = scmp.eq.s32.totalorder %s11, 0
      %p129 = por %p127, %p128
      %p130 = scmp.ne.s32.totalorder %s122, %s124
      %p131 = scmp.eq.s32.totalorder %s16, 3
      %p132 = por %p130, %p131
      %p133 = scmp.ne.s32.totalorder %s124, %s125
      %p134 = scmp.eq.s32.totalorder %s16, 0
      %p135 = por %p133, %p134
      %p136 = scmp.ne.s32.totalorder %s124, %s125
      %p137 = scmp.eq.s32.totalorder %s17, 3
      %p138 = por %p136, %p137
      %p140 = scmp.ne.s32.totalorder %s125, %s139
      %p141 = scmp.eq.s32.totalorder %s17, 0
      %p142 = por %p140, %p141
      %s143 = ssub.s32 %s18, %s30
      %s144 = ssub.s32 %s19, %s26
      %s145 = sor.u32 %s143, %s144
      %p146 = scmp.eq.s32.totalorder %s145, 0
      %s148 = sadd.s32 %s147, 1
      %s149 = scalar_select %p146, %s147, %s148
      %p152 = pneg %p146
      %p153 = scmp.eq.s32.totalorder %s11, 3
      %p154 = por %p152, %p153
      %p155 = scmp.ne.s32.totalorder %s147, %s150
      %p156 = scmp.eq.s32.totalorder %s11, 0
      %p157 = por %p155, %p156
      %p158 = scmp.ne.s32.totalorder %s147, %s150
      %p159 = scmp.eq.s32.totalorder %s16, 3
      %p160 = por %p158, %p159
      %p161 = scmp.ne.s32.totalorder %s150, %s151
      %p162 = scmp.eq.s32.totalorder %s16, 0
      %p163 = por %p161, %p162
      %p164 = scmp.ne.s32.totalorder %s150, %s151
      %p165 = scmp.eq.s32.totalorder %s17, 3
      %p166 = por %p164, %p165
      %p168 = scmp.ne.s32.totalorder %s151, %s167
      %p169 = scmp.eq.s32.totalorder %s17, 0
      %p170 = por %p168, %p169
      %p171 = scmp.le.s32.totalorder 1, %s11
      %p172 = scmp.lt.s32.totalorder %s11, 5
      %p173 = pnand %p171, %p172
      %p174 = pneg %p173
      // Predicated region
      $region9: #{segmodel_forward.1} parent=5 // pred_check
        _
      $region10: #{segmodel_forward.1} parent=5 // pred_check_branch
        %176 = sbr.rel (%p173) target = $region12
      $region11: #{segmodel_forward.1} parent=5 // pred_region
        %s177 = ssub.s32 %s11, 1
        // Predicated region
        $region13: #{segmodel_forward.1} parent=11 // pred_check
          %p178 = pneg %p72
        $region14: #{segmodel_forward.1} parent=11 // pred_check_branch
          %180 = sbr.rel (%p178) target = $region16
        $region15: #{segmodel_forward.1} parent=11 // pred_region
          _
        $region16: #{segmodel_forward.1} parent=11 // pred_fallthru
          _
        // Predicated region
        $region17: #{segmodel_forward.1} parent=11 // pred_check
          %p181 = pneg %p93
        $region18: #{segmodel_forward.1} parent=11 // pred_check_branch
          %183 = sbr.rel (%p181) target = $region20
        $region19: #{segmodel_forward.1} parent=11 // pred_region
          _
        $region20: #{segmodel_forward.1} parent=11 // pred_fallthru
          _
        // Predicated region
        $region21: #{segmodel_forward.1} parent=11 // pred_check
          %p184 = pneg %p114
        $region22: #{segmodel_forward.1} parent=11 // pred_check_branch
          %186 = sbr.rel (%p184) target = $region24
        $region23: #{segmodel_forward.1} parent=11 // pred_region
          _
        $region24: #{segmodel_forward.1} parent=11 // pred_fallthru
          _
        // Predicated region
        $region25: #{segmodel_forward.1} parent=11 // pred_check
          %p187 = pneg %p135
        $region26: #{segmodel_forward.1} parent=11 // pred_check_branch
          %189 = sbr.rel (%p187) target = $region28
        $region27: #{segmodel_forward.1} parent=11 // pred_region
          _
        $region28: #{segmodel_forward.1} parent=11 // pred_fallthru
          _
      $region12: #{segmodel_forward.1} parent=5 // pred_fallthru
        _
      %p190 = scmp.lt.s32.totalorder %s11, 4
      // Predicated region
      $region29: #{segmodel_forward.1} parent=5 // pred_check
        %p191 = pneg %p190
      $region30: #{segmodel_forward.1} parent=5 // pred_check_branch
        %193 = sbr.rel (%p191) target = $region32
      $region31: #{segmodel_forward.1} parent=5 // pred_region
        // Predicated region
        $region33: #{segmodel_forward.1} parent=31 // pred_check
          %p194 = pneg %p45
        $region34: #{segmodel_forward.1} parent=31 // pred_check_branch
          %196 = sbr.rel (%p194) target = $region36
        $region35: #{segmodel_forward.1} parent=31 // pred_region
          %p197 = scmp.lt.s32.totalorder %s18, 1
          %s198 = scalar_select %p197, %s18, 1
          %p199 = scmp.lt.s32.totalorder %s19, 1
          %s200 = scalar_select %p199, %s19, 1
          %s201 = smul.addr %s200, 2
          %s202 = smul.addr %s198, 4
          %s203 = sadd.s32 %s201, %s202
          %s204 = smul.addr %s203, 2
          %s205 = scalar_lea.vmem %s0, %s204
        $region36: #{segmodel_forward.1} parent=31 // pred_fallthru
          _
      $region32: #{segmodel_forward.1} parent=5 // pred_fallthru
        _
      %p206 = scmp.le.s32.totalorder 1, %s11
      %p207 = scmp.lt.s32.totalorder %s11, 5
      %p208 = pnand %p206, %p207
      %p209 = pneg %p208
      // Predicated region
      $region37: #{segmodel_forward.1} parent=5 // pred_check
        _
      $region38: #{segmodel_forward.1} parent=5 // pred_check_branch
        %211 = sbr.rel (%p208) target = $region40
      $region39: #{segmodel_forward.1} parent=5 // pred_region
        %s212 = ssub.s32 %s11, 1
        %p213 = scmp.lt.s32.totalorder %s20, 1
        %s214 = scalar_select %p213, %s20, 1
        %p215 = scmp.lt.s32.totalorder %s21, 1
        %s216 = scalar_select %p215, %s21, 1
        %s217 = smul.addr %s216, 2
        %s218 = smul.addr %s214, 4
        %s219 = sadd.s32 %s217, %s218
        %s220 = smul.addr %s219, 2
        %s221 = scalar_lea.vmem %s0, %s220
        %p222 = pneg %p51
        %p223 = pneg %p48
        %p224 = pneg %p72
        %p225 = pneg %p69
        %p226 = pneg %p93
        %p227 = pneg %p90
        %p228 = pneg %p114
        %p229 = pneg %p111
        %p230 = pneg %p135
        %p231 = pneg %p132
        %p232 = pneg %p163
        %p233 = pneg %p160
        %s234 = sand.u32 %s150, 1
        %s235 = sand.u32 %s150, 1
        %s236 = smul.addr %s235, 8
        %s237 = scalar_lea.vmem [#allocation3], %s236
        %p238 = scmp.lt.s32.totalorder %s20, 1
        %s239 = scalar_select %p238, %s20, 1
        %p240 = scmp.lt.s32.totalorder %s21, 1
        %s241 = scalar_select %p240, %s21, 1
        %s242 = smul.addr %s241, 2
        %s243 = smul.addr %s239, 4
        %s244 = sadd.s32 %s242, %s243
        %s245 = smul.addr %s244, 2
        %s246 = scalar_lea.vmem %s0, %s245
        %v248 = vld [vmem:[%s246] sm:$0xf]
        %v251 = vunpack.c.l.s4 1983009808
        %v252 = vunpack.c.0.s8 %v251
        %v253 = vlaneseq
        %v254 = vshrl.u32 %v253, 7
        %v255 = vsub.s32 %v252, %v254
        %v256 = vrot.slane %v248, %v255
        %vm258 = vcmask 1041408
        %vm259 = vcmask 128004
        %vm260 = vmor %vm259, %vm258
        %261 = vst.msk [vmem:[#allocation2] sm:$0x33] %vm260, %v256
        %v262 = vld [vmem:[%s246] sm:$0xf]
        %v264 = vcombine.low %v262, %v262
        %v266 = vunpack.c.l.s4 1983009808
        %v267 = vunpack.c.0.s8 %v266
        %v268 = vlaneseq
        %v269 = vshrl.u32 %v268, 7
        %v270 = vsub.s32 %v267, %v269
        %v271 = vrot.slane %v264, %v270
        %272 = vrot.lane.b32.xlu0 %v271, 127
        %v273 = vpop.permute.xlu0 %272
        %v274 = vrot.slane %v273, 4
        %vm275 = vcmask 1039360
        %v276 = vsel %vm275, %v273, %v274
        %vm278 = vcmask 1043458
        %vm279 = vcmask 130054
        %vm280 = vmor %vm279, %vm278
        %281 = vst.msk [vmem:[#allocation2] sm:$0xcc] %vm280, %v276
        %v282 = vld [vmem:[%s246] sm:$0xf]
        %v285 = vunpack.c.l.s4 1983009808
        %v286 = vunpack.c.0.s8 %v285
        %v287 = vlaneseq
        %v288 = vshrl.u32 %v287, 7
        %v289 = vsub.s32 %v286, %v288
        %v290 = vrot.slane %v282, %v289
        %291 = vrot.lane.b32.xlu0 %v290, 126
        %v292 = vpop.permute.xlu0 %291
        %v293 = vrot.slane %v292, 4
        %vm294 = vcmask 1031168
        %v295 = vsel %vm294, %v292, %v293
        %297 = vst.msk [vmem:[#allocation2 + $0x8] sm:$0x33] %vm260, %v295
        %v298 = vld [vmem:[%s246] sm:$0xf]
        %v300 = vcombine.low %v298, %v298
        %v302 = vunpack.c.l.s4 1983009808
        %v303 = vunpack.c.0.s8 %v302
        %v304 = vlaneseq
        %v305 = vshrl.u32 %v304, 7
        %v306 = vsub.s32 %v303, %v305
        %v307 = vrot.slane %v300, %v306
        %308 = vrot.lane.b32.xlu0 %v307, 110
        %v309 = vpop.permute.xlu0 %308
        %v310 = vrot.slane %v309, 4
        %vm311 = vcmask 900096
        %v312 = vsel %vm311, %v309, %v310
        %314 = vst.msk [vmem:[#allocation2 + $0x8] sm:$0xcc] %vm280, %v312
        %v315 = vld [vmem:[%s246] sm:$0xf]
        %v318 = vunpack.c.l.s4 1983009808
        %v319 = vunpack.c.0.s8 %v318
        %v320 = vlaneseq
        %v321 = vshrl.u32 %v320, 7
        %v322 = vsub.s32 %v319, %v321
        %v323 = vrot.slane %v315, %v322
        %324 = vrot.lane.b32.xlu0 %v323, 109
        %v325 = vpop.permute.xlu0 %324
        %v326 = vrot.slane %v325, 4
        %vm327 = vcmask 891904
        %v328 = vsel %vm327, %v325, %v326
        %330 = vst.msk [vmem:[#allocation2 + $0x10] sm:$0x33] %vm260, %v328
        %v331 = vld [vmem:[%s246] sm:$0xf]
        %v333 = vcombine.low %v331, %v331
        %v335 = vunpack.c.l.s4 1983009808
        %v336 = vunpack.c.0.s8 %v335
        %v337 = vlaneseq
        %v338 = vshrl.u32 %v337, 7
        %v339 = vsub.s32 %v336, %v338
        %v340 = vrot.slane %v333, %v339
        %341 = vrot.lane.b32.xlu0 %v340, 108
        %v342 = vpop.permute.xlu0 %341
        %v343 = vrot.slane %v342, 4
        %vm344 = vcmask 883712
        %v345 = vsel %vm344, %v342, %v343
        %347 = vst.msk [vmem:[#allocation2 + $0x10] sm:$0xcc] %vm280, %v345
        %v348 = vld [vmem:[%s246] sm:$0xf]
        %v351 = vunpack.c.l.s4 1983009808
        %v352 = vunpack.c.0.s8 %v351
        %v353 = vlaneseq
        %v354 = vshrl.u32 %v353, 7
        %v355 = vsub.s32 %v352, %v354
        %v356 = vrot.slane %v348, %v355
        %357 = vrot.lane.b32.xlu0 %v356, 92
        %v358 = vpop.permute.xlu0 %357
        %v359 = vrot.slane %v358, 4
        %vm360 = vcmask 752640
        %v361 = vsel %vm360, %v358, %v359
        %363 = vst.msk [vmem:[#allocation2 + $0x18] sm:$0x33] %vm260, %v361
        %v364 = vld [vmem:[%s246] sm:$0xf]
        %v366 = vcombine.low %v364, %v364
        %v368 = vunpack.c.l.s4 1983009808
        %v369 = vunpack.c.0.s8 %v368
        %v370 = vlaneseq
        %v371 = vshrl.u32 %v370, 7
        %v372 = vsub.s32 %v369, %v371
        %v373 = vrot.slane %v366, %v372
        %374 = vrot.lane.b32.xlu0 %v373, 91
        %v375 = vpop.permute.xlu0 %374
        %v376 = vrot.slane %v375, 4
        %vm377 = vcmask 744448
        %v378 = vsel %vm377, %v375, %v376
        %380 = vst.msk [vmem:[#allocation2 + $0x18] sm:$0xcc] %vm280, %v378
        %v381 = vld [vmem:[%s246] sm:$0xf]
        %v384 = vunpack.c.l.s4 1983009808
        %v385 = vunpack.c.0.s8 %v384
        %v386 = vlaneseq
        %v387 = vshrl.u32 %v386, 7
        %v388 = vsub.s32 %v385, %v387
        %v389 = vrot.slane %v381, %v388
        %390 = vrot.lane.b32.xlu0 %v389, 90
        %v391 = vpop.permute.xlu0 %390
        %v392 = vrot.slane %v391, 4
        %vm393 = vcmask 736256
        %v394 = vsel %vm393, %v391, %v392
        %396 = vst.msk [vmem:[#allocation2 + $0x20] sm:$0x33] %vm260, %v394
        %v397 = vld [vmem:[%s1] sm:$0xf]
        %v398 = vld [vmem:[%s1 + $0x4] sm:$0xf]
        %v399 = vld [vmem:[%s1 + $0x8] sm:$0xf]
        %v400 = vld [vmem:[%s1 + $0xc] sm:$0xf]
        %v401 = vld [vmem:[#allocation2] sm:$0xff]
        %v402 = vld [vmem:[#allocation2 + $0x8] sm:$0xff]
        %v403 = vld [vmem:[#allocation2 + $0x10] sm:$0xff]
        %v404 = vld [vmem:[#allocation2 + $0x18] sm:$0xff]
        %v405 = vld [vmem:[#allocation2 + $0x20] sm:$0x33]
        %v406 = vld [vmem:[%s2] sm:$0xff]
        %v407 = vld [vmem:[%s2 + $0x8] sm:$0xff]
        %v408 = vld [vmem:[%s2 + $0x10] sm:$0xff]
        %v409 = vld [vmem:[%s2 + $0x18] sm:$0xff]
        %411 = vset.pattern.permute.xlu0 0
        %412 = vperm.xlu0 %411, %v406
        %v413 = vpop.permute.xlu0 %412
        %416 = vset.pattern.permute.xlu0 0
        %417 = vperm.xlu0 %416, %v407
        %v418 = vpop.permute.xlu0 %417
        %421 = vset.pattern.permute.xlu0 0
        %422 = vperm.xlu0 %421, %v408
        %v423 = vpop.permute.xlu0 %422
        %426 = vset.pattern.permute.xlu0 0
        %427 = vperm.xlu0 %426, %v409
        %v428 = vpop.permute.xlu0 %427
        %v434 = vunpack.c.l.b16 %v397
        %v435 = vunpack.c.l.b16 %v398
        %v436 = vunpack.c.l.b16 %v399
        %v437 = vunpack.c.l.b16 %v400
        %v438 = vpack.c.b16 %v435, %v434
        %v439 = vpack.c.b16 %v437, %v436
        %v445 = vunpack.c.l.b16 %v401
        %v446 = vunpack.c.h.b16 %v401
        %v447 = vunpack.c.l.b16 %v402
        %v448 = vunpack.c.h.b16 %v402
        %v449 = vunpack.c.l.b16 %v403
        %v450 = vunpack.c.h.b16 %v403
        %v451 = vunpack.c.l.b16 %v404
        %v452 = vunpack.c.h.b16 %v404
        %v453 = vunpack.c.l.b16 %v405
        %v454 = vunpack.c.h.b16 %v405
        %v455 = vpack.c.b16 %v447, %v445
        %v456 = vpack.c.b16 %v448, %v446
        %v457 = vpack.c.b16 %v451, %v449
        %v458 = vpack.c.b16 %v452, %v450
        %v459 = vpack.c.b16 %v453, %v453
        %v460 = vpack.c.b16 %v454, %v454
        %vm465 = vcmask 293888
        %v467 = vsel %vm465, %v438, 0
        %v470 = vsel %vm465, %v439, 0
        %v473 = vsel %vm258, %v459, 0
        %v476 = vsel %vm258, %v460, 0
        %478 = vmatprep.subr.bf16.mxu0 0
        %479 = vmatpush1.bf16.msra.mxu0 0
        %480 = vmatprep.subr.bf16.mxu0 0
        %481 = vmatpush1.bf16.msra.mxu0 0
        %482 = vmatprep.subr.bf16.mxu0 0
        %483 = vmatpush1.bf16.msra.mxu0 0
        %484 = vmatprep.subr.bf16.mxu0 0
        %485 = vmatpush1.bf16.msra.mxu0 0
        %486 = vmatprep.subr.bf16.mxu0 0
        %487 = vmatpush1.bf16.msra.mxu0 0
        %488 = vmatprep.subr.bf16.mxu0 %v476
        %489 = vmatpush1.bf16.msra.mxu0 %v473
        %490 = vmatprep.subr.bf16.mxu0 %v458
        %491 = vmatpush1.bf16.msra.mxu0 %v457
        %492 = vmatprep.subr.bf16.mxu0 %v456
        %493 = vmatpush1.bf16.msra.mxu0 %v455
        %494 = vmatprep.subr.bf16.mxu0 0
        %495 = vmatpush2.bf16.msra.mxu0 0
        %496 = vmatprep.subr.bf16.mxu0 0
        %497 = vmatpush2.bf16.msra.mxu0 0
        %498 = vmatprep.subr.bf16.mxu0 0
        %499 = vmatpush2.bf16.msra.mxu0 0
        %500 = vmatprep.subr.bf16.mxu0 0
        %501 = vmatpush2.bf16.msra.mxu0 0
        %502 = vmatprep.subr.bf16.mxu0 0
        %503 = vmatpush2.bf16.msra.mxu0 0
        %504 = vmatprep.subr.bf16.mxu0 0
        %505 = vmatpush2.bf16.msra.mxu0 0
        %506 = vmatprep.subr.bf16.mxu0 0
        %507 = vmatpush2.bf16.msra.mxu0 0
        %508 = vmatprep.subr.bf16.mxu0 0
        %509 = vmatpush2.bf16.msra.mxu0 0
        %510 = vmatprep.mubr.bf16.mxu0 0
        %511 = vmatmul.mubr.bf16.gmra.mxu0 %v467
        %v512 = vpop.f32.mrf.mxu0
        %v513 = vadd.f32 %v413, %v512
        %v514 = vpop.f32.mrf.mxu0
        %v515 = vadd.f32 %v413, %v514
        %v516 = vpop.f32.mrf.mxu0
        %v517 = vadd.f32 %v418, %v516
        %v518 = vpop.f32.mrf.mxu0
        %v519 = vadd.f32 %v418, %v518
        %520 = vmatprep.mubr.bf16.mxu0 0
        %521 = vmatmul.mubr.bf16.gmra.mxu0 %v470
        %v522 = vpop.f32.mrf.mxu0
        %v523 = vadd.f32 %v423, %v522
        %v524 = vpop.f32.mrf.mxu0
        %v525 = vadd.f32 %v423, %v524
        %v526 = vpop.f32.mrf.mxu0
        %v527 = vadd.f32 %v428, %v526
        %v528 = vpop.f32.mrf.mxu0
        %v529 = vadd.f32 %v428, %v528
        %530 = vdwg.mxu0
        %v531 = vmax.f32 %v513, 0.0
        %v532 = vmax.f32 %v515, 0.0
        %v533 = vmax.f32 %v517, 0.0
        %v534 = vmax.f32 %v519, 0.0
        %v535 = vmax.f32 %v523, 0.0
        %v536 = vmax.f32 %v525, 0.0
        %v537 = vmax.f32 %v527, 0.0
        %v538 = vmax.f32 %v529, 0.0
        %v539 = vld [vmem:[%s3] sm:$0xf]
        %v540 = vld [vmem:[%s3 + $0x4] sm:$0x1]
        %v541 = vpack.c.bf16 %v533, %v531
        %v542 = vpack.c.bf16 %v534, %v532
        %v543 = vpack.c.bf16 %v537, %v535
        %v544 = vpack.c.bf16 %v538, %v536
        %v545 = vld [vmem:[%s4] sm:$0xff]
        %v546 = vld [vmem:[%s4 + $0x8] sm:$0x3]
        %548 = vset.pattern.permute.xlu0 0
        %549 = vperm.xlu0 %548, %v545
        %v550 = vpop.permute.xlu0 %549
        %553 = vset.pattern.permute.xlu0 0
        %554 = vperm.xlu0 %553, %v546
        %v555 = vpop.permute.xlu0 %554
        %v559 = vunpack.c.l.b16 %v539
        %v560 = vunpack.c.l.b16 %v540
        %v561 = vpack.c.b16 %v560, %v559
        %vm562 = vcmask 261120
        %v564 = vsel %vm562, %v561, 0
        %566 = vmatprep.subr.bf16.mxu0 0
        %567 = vmatpush1.bf16.msra.mxu0 0
        %568 = vmatprep.subr.bf16.mxu0 0
        %569 = vmatpush1.bf16.msra.mxu0 0
        %570 = vmatprep.subr.bf16.mxu0 0
        %571 = vmatpush1.bf16.msra.mxu0 0
        %572 = vmatprep.subr.bf16.mxu0 0
        %573 = vmatpush1.bf16.msra.mxu0 0
        %574 = vmatprep.subr.bf16.mxu0 0
        %575 = vmatpush1.bf16.msra.mxu0 0
        %576 = vmatprep.subr.bf16.mxu0 0
        %577 = vmatpush1.bf16.msra.mxu0 0
        %578 = vmatprep.subr.bf16.mxu0 %v544
        %579 = vmatpush1.bf16.msra.mxu0 %v543
        %580 = vmatprep.subr.bf16.mxu0 %v542
        %581 = vmatpush1.bf16.msra.mxu0 %v541
        %582 = vmatprep.subr.bf16.mxu0 0
        %583 = vmatpush2.bf16.msra.mxu0 0
        %584 = vmatprep.subr.bf16.mxu0 0
        %585 = vmatpush2.bf16.msra.mxu0 0
        %586 = vmatprep.subr.bf16.mxu0 0
        %587 = vmatpush2.bf16.msra.mxu0 0
        %588 = vmatprep.subr.bf16.mxu0 0
        %589 = vmatpush2.bf16.msra.mxu0 0
        %590 = vmatprep.subr.bf16.mxu0 0
        %591 = vmatpush2.bf16.msra.mxu0 0
        %592 = vmatprep.subr.bf16.mxu0 0
        %593 = vmatpush2.bf16.msra.mxu0 0
        %594 = vmatprep.subr.bf16.mxu0 0
        %595 = vmatpush2.bf16.msra.mxu0 0
        %596 = vmatprep.subr.bf16.mxu0 0
        %597 = vmatpush2.bf16.msra.mxu0 0
        %598 = vmatprep.mubr.bf16.mxu0 0
        %599 = vmatmul.mubr.bf16.gmra.mxu0 %v564
        %v600 = vpop.f32.mrf.mxu0
        %v601 = vadd.f32 %v550, %v600
        %v602 = vpop.f32.mrf.mxu0
        %v603 = vadd.f32 %v550, %v602
        %v604 = vpop.f32.mrf.mxu0
        %v605 = vadd.f32 %v555, %v604
        %v606 = vpop.f32.mrf.mxu0
        %v607 = vadd.f32 %v555, %v606
        %608 = vdwg.mxu0
        %v609 = vpack.c.bf16 %v605, %v601
        %v611 = vunpack.c.l.b16 %v609
        %v612 = vunpack.c.h.b16 %v609
        %v613 = vpack.c.b16 %v611, %v611
        %v614 = vpack.c.b16 %v612, %v612
        %vm617 = vcmask 125952
        %618 = vst.msk [vmem:[%s237] sm:$0xf] %vm617, %v613
        %vm619 = vcmask 122880
        %620 = vst.msk [vmem:[%s237 + $0x4] sm:$0x1] %vm619, %v614
        %621 = vrot.lane.b32.xlu0 %v613, 126
        %v622 = vpop.permute.xlu0 %621
        %623 = vrot.lane.b32.xlu0 %v614, 126
        %v624 = vpop.permute.xlu0 %623
        %vm627 = vcmask 257152
        %628 = vst.msk [vmem:[%s237] sm:$0xf] %vm627, %v622
        %vm629 = vcmask 254080
        %630 = vst.msk [vmem:[%s237 + $0x4] sm:$0x1] %vm629, %v624
        %631 = vrot.lane.b32.xlu0 %v613, 124
        %v632 = vpop.permute.xlu0 %631
        %633 = vrot.lane.b32.xlu0 %v614, 124
        %v634 = vpop.permute.xlu0 %633
        %vm637 = vcmask 388352
        %638 = vst.msk [vmem:[%s237] sm:$0xf] %vm637, %v632
        %vm639 = vcmask 385280
        %640 = vst.msk [vmem:[%s237 + $0x4] sm:$0x1] %vm639, %v634
        %641 = vrot.lane.b32.xlu0 %v613, 122
        %v642 = vpop.permute.xlu0 %641
        %643 = vrot.lane.b32.xlu0 %v614, 122
        %v644 = vpop.permute.xlu0 %643
        %vm647 = vcmask 519552
        %648 = vst.msk [vmem:[%s237] sm:$0xf] %vm647, %v642
        %vm649 = vcmask 516480
        %650 = vst.msk [vmem:[%s237 + $0x4] sm:$0x1] %vm649, %v644
        %651 = vrot.lane.b32.xlu0 %v613, 120
        %v652 = vpop.permute.xlu0 %651
        %653 = vrot.lane.b32.xlu0 %v614, 120
        %v654 = vpop.permute.xlu0 %653
        %vm657 = vcmask 650752
        %658 = vst.msk [vmem:[%s237] sm:$0xf] %vm657, %v652
        %vm659 = vcmask 647680
        %660 = vst.msk [vmem:[%s237 + $0x4] sm:$0x1] %vm659, %v654
        %661 = vrot.lane.b32.xlu0 %v613, 118
        %v662 = vpop.permute.xlu0 %661
        %663 = vrot.lane.b32.xlu0 %v614, 118
        %v664 = vpop.permute.xlu0 %663
        %vm667 = vcmask 781952
        %668 = vst.msk [vmem:[%s237] sm:$0xf] %vm667, %v662
        %vm669 = vcmask 778880
        %670 = vst.msk [vmem:[%s237 + $0x4] sm:$0x1] %vm669, %v664
        %671 = vrot.lane.b32.xlu0 %v613, 116
        %v672 = vpop.permute.xlu0 %671
        %673 = vrot.lane.b32.xlu0 %v614, 116
        %v674 = vpop.permute.xlu0 %673
        %vm677 = vcmask 913152
        %678 = vst.msk [vmem:[%s237] sm:$0xf] %vm677, %v672
        %vm679 = vcmask 910080
        %680 = vst.msk [vmem:[%s237 + $0x4] sm:$0x1] %vm679, %v674
        %v681 = vpack.c.bf16 %v607, %v603
        %v683 = vunpack.c.l.b16 %v681
        %v684 = vunpack.c.h.b16 %v681
        %v685 = vpack.c.b16 %v683, %v611
        %v686 = vpack.c.b16 %v684, %v612
        %687 = vrot.lane.b32.xlu0 %v685, 114
        %v688 = vpop.permute.xlu0 %687
        %689 = vrot.lane.b32.xlu0 %v686, 114
        %v690 = vpop.permute.xlu0 %689
        %v691 = vrot.slane %v688, 4
        %v692 = vrot.slane %v690, 4
        %vm693 = vcmask 932864
        %v694 = vsel %vm693, %v688, %v691
        %v695 = vsel %vm693, %v690, %v692
        %vm698 = vcmask 1044352
        %699 = vst.msk [vmem:[%s237] sm:$0xf] %vm698, %v694
        %vm700 = vcmask 1041280
        %701 = vst.msk [vmem:[%s237 + $0x4] sm:$0x1] %vm700, %v695
        %s702 = sand.u32 %s150, 1
        %s703 = sand.u32 %s150, 1
        %s704 = smul.addr %s703, 8
        %s705 = scalar_lea.vmem [#allocation3], %s704
        // Predicated region
        $region41: #{segmodel_forward.1} parent=39 // pred_check
          %p706 = pneg %p160
        $region42: #{segmodel_forward.1} parent=39 // pred_check_branch
          %708 = sbr.rel (%p706) target = $region44
        $region43: #{segmodel_forward.1} parent=39 // pred_region
          %s709 = smul.addr %s20, 4
          %s710 = sadd.s32 %s21, %s709
          %s711 = smul.addr %s710, 4
          %s712 = scalar_lea.vmem %s5, %s711
          // Predicated region
          $region45: #{segmodel_forward.1} parent=43 // pred_check
            _
          $region46: #{segmodel_forward.1} parent=43 // pred_check_branch
            %714 = sbr.rel (0) target = $region48
          $region47: #{segmodel_forward.1} parent=43 // pred_region
            // Predicated region
            $region49: #{segmodel_forward.1} parent=47 // pred_check
              _
            $region50: #{segmodel_forward.1} parent=47 // pred_check_branch
              %716 = sbr.rel target = $region52
            $region51: #{segmodel_forward.1} parent=47 // pred_region
              // Predicated region
              $region64: #{segmodel_forward.1} parent=51 // pred_check
                _
              $region65: #{segmodel_forward.1} parent=51 // pred_check_branch
                %734 = sbr.rel (0) target = $region67
              $region66: #{segmodel_forward.1} parent=51 // pred_region
                loop: start=0, step=1, limit=1
                $region68: #{segmodel_forward.1} parent=66 // loop_pre_header
                  _
                $region69: #{segmodel_forward.1} parent=66 // loop_header
                  %s736 = sphi 0, %s740
                  %p737 = scmp.ge.s32.totalorder %s736, 1
                  %s741 = sphi %s705, %s705
                  %s742 = sphi %s712, %s712
                $region70: #{segmodel_forward.1} parent=66 // loop_header_branch
                  %739 = sbr.rel (%p737) target = $region74
                $region71: #{segmodel_forward.1} parent=66 // loop_body
                  _
                $region72: #{segmodel_forward.1} parent=66 // loop_footer
                  %s740 = sadd.s32 1, %s736
                $region73: #{segmodel_forward.1} parent=66 // loop_footer_branch
                  %735 = sbr.rel target = $region69
                $region74: #{segmodel_forward.1} parent=66 // loop_exit
                  _
                %s744 = ssub.s32 16, 1
                loop: start=0, step=1, limit=1
                $region75: #{segmodel_forward.1} parent=66 // loop_pre_header
                  _
                $region76: #{segmodel_forward.1} parent=66 // loop_header
                  %s746 = sphi 0, %s750
                  %p747 = scmp.ge.s32.totalorder %s746, 1
                  %s751 = sphi %s705, %s705
                  %s752 = sphi %s712, %s712
                $region77: #{segmodel_forward.1} parent=66 // loop_header_branch
                  %749 = sbr.rel (%p747) target = $region81
                $region78: #{segmodel_forward.1} parent=66 // loop_body
                  %v753 = vld [vmem:[%s751] sm:%s744]
                  %754 = vst [vmem:[%s752] sm:%s744] %v753
                  %v755 = vld [vmem:[%s751 + $0x4] sm:%s744]
                  %756 = vst [vmem:[%s752 + $0x8] sm:%s744] %v755
                $region79: #{segmodel_forward.1} parent=66 // loop_footer
                  %s750 = sadd.s32 1, %s746
                $region80: #{segmodel_forward.1} parent=66 // loop_footer_branch
                  %745 = sbr.rel target = $region76
                $region81: #{segmodel_forward.1} parent=66 // loop_exit
                  _
              $region67: #{segmodel_forward.1} parent=51 // pred_fallthru
                _
            $region52: #{segmodel_forward.1} parent=47 // pred_fallthru
              _
            // Predicated region
            $region53: #{segmodel_forward.1} parent=47 // pred_check
              _
            $region54: #{segmodel_forward.1} parent=47 // pred_check_branch
              %718 = sbr.rel (0) target = $region56
            $region55: #{segmodel_forward.1} parent=47 // pred_region
              %s720 = ssub.s32 16, 1
              loop: start=0, step=1, limit=1
              $region57: #{segmodel_forward.1} parent=55 // loop_pre_header
                _
              $region58: #{segmodel_forward.1} parent=55 // loop_header
                %s722 = sphi 0, %s726
                %p723 = scmp.ge.s32.totalorder %s722, 1
                %s727 = sphi %s705, %s705
                %s728 = sphi %s712, %s712
              $region59: #{segmodel_forward.1} parent=55 // loop_header_branch
                %725 = sbr.rel (%p723) target = $region63
              $region60: #{segmodel_forward.1} parent=55 // loop_body
                %v729 = vld [vmem:[%s727] sm:%s720]
                %730 = vst [vmem:[%s728] sm:%s720] %v729
                %v731 = vld [vmem:[%s727 + $0x4] sm:%s720]
                %732 = vst [vmem:[%s728 + $0x8] sm:%s720] %v731
              $region61: #{segmodel_forward.1} parent=55 // loop_footer
                %s726 = sadd.s32 1, %s722
              $region62: #{segmodel_forward.1} parent=55 // loop_footer_branch
                %721 = sbr.rel target = $region58
              $region63: #{segmodel_forward.1} parent=55 // loop_exit
                _
            $region56: #{segmodel_forward.1} parent=47 // pred_fallthru
              _
          $region48: #{segmodel_forward.1} parent=43 // pred_fallthru
            _
          %757 = vnop
        $region44: #{segmodel_forward.1} parent=39 // pred_fallthru
          _
      $region40: #{segmodel_forward.1} parent=5 // pred_fallthru
        _
      %p758 = scmp.le.s32.totalorder 2, %s11
      // Predicated region
      $region82: #{segmodel_forward.1} parent=5 // pred_check
        %p759 = pneg %p758
      $region83: #{segmodel_forward.1} parent=5 // pred_check_branch
        %761 = sbr.rel (%p759) target = $region85
      $region84: #{segmodel_forward.1} parent=5 // pred_region
        %s762 = ssub.s32 %s11, 2
        // Predicated region
        $region86: #{segmodel_forward.1} parent=84 // pred_check
          %p763 = pneg %p166
        $region87: #{segmodel_forward.1} parent=84 // pred_check_branch
          %765 = sbr.rel (%p763) target = $region89
        $region88: #{segmodel_forward.1} parent=84 // pred_region
          %s766 = sand.u32 %s151, 1
          %s767 = sand.u32 %s151, 1
          %s768 = smul.addr %s767, 8
          %s769 = scalar_lea.vmem [#allocation3], %s768
        $region89: #{segmodel_forward.1} parent=84 // pred_fallthru
          _
      $region85: #{segmodel_forward.1} parent=5 // pred_fallthru
        _
    $region6: #{segmodel_forward.1} parent=1 // loop_footer
      %s15 = sadd.s32 1, %s11
    $region7: #{segmodel_forward.1} parent=1 // loop_footer_branch
      %10 = sbr.rel target = $region3
    $region8: #{segmodel_forward.1} parent=1 // loop_exit
      _

</llo_original>
